<compile_context>
chip_gen: v5e
topology: v5e:2x2
jax: 0.10.0
libtpu: 0.0.40
codegen_flags: <defaults>
</compile_context>

<pallas_src>
import functools
import re
from typing import NamedTuple

import jax
import jax.numpy as jnp
from jax.experimental import pallas as pl
from jax.experimental.pallas import tpu as pltpu


def _round_up(a, b):
    return (a + b - 1) // b * b


def _tpu_generation():
    try:
        kind = jax.devices()[0].device_kind
        m = re.search(r"\d+", kind)
        if m:
            return int(m.group(0))
    except Exception:
        pass
    return 0


def _vmem_capacity_bytes(gen):
    try:
        return int(pltpu.get_tpu_info().vmem_capacity_bytes)
    except Exception:
        pass
    if gen >= 7:
        return 64 << 20          # v7x: 64 MiB per TensorCore
    if gen in (5, 6):
        return 128 << 20         # v5e / v6e: 128 MiB
    return 64 << 20              # unknown: be conservative


# --------------------------------------------------------------------------- #
# One-time parameter packing (NOT on the per-forward path)
# --------------------------------------------------------------------------- #
class PackedGLUParams(NamedTuple):
    """Wl|Wg fused into one (C_in, 2*C_out_p) slab, interleaved per block_n tile."""
    w_fused: jax.Array          # (C_in, 2*C_out_p), compute dtype
    b_fused: jax.Array          # (1, 2*C_out_p), f32
    c_out: int                  # un-padded output width
    block_n: int                # lane-dense output tile width (multiple of 128)


def _pick_block_n(c_out_p, cap):
    """Largest multiple-of-128 divisor of c_out_p that is <= cap (>=128)."""
    n128 = c_out_p // 128
    best = 128
    for d in range(1, n128 + 1):
        if n128 % d == 0 and d * 128 <= cap:
            best = d * 128
    return best


def pack_glu_params(wl, bl, wg, bg, *, compute_dtype=jnp.bfloat16, block_n=None):
    """Pack GLU parameters ONCE at init time.

    wl, wg : (C_in, C_out)  (= PyTorch Linear.weight.T)
    bl, bg : (C_out,)
    compute_dtype : MXU dtype for x / weights (bf16 is MXU-native on v5e/v6e/v7x);
                    accumulation, bias, sigmoid and the gated product stay in f32.
    """
    c_in, c_out = wl.shape
    # Pad C_out only up to a multiple of 128 (lane-dense stores, minimal waste),
    # then choose block_n among divisors of the padded width.
    c_out_p = _round_up(c_out, 128)
    if block_n is None:
        gen = _tpu_generation()
        cap = 1024 if gen == 6 else 512      # v6e has 128 MiB VMEM -> go wider
        block_n = _pick_block_n(c_out_p, cap)
    assert block_n % 128 == 0 and c_out_p % block_n == 0
    n_tiles = c_out_p // block_n

    cd = jnp.dtype(compute_dtype)
    wl_p = jnp.zeros((c_in, c_out_p), cd).at[:, :c_out].set(wl.astype(cd))
    wg_p = jnp.zeros((c_in, c_out_p), cd).at[:, :c_out].set(wg.astype(cd))
    # Per N tile j: columns [2*j*bn, 2*j*bn+bn) hold Wl's tile, the next bn hold
    # Wg's tile, so the in-kernel lin/gate split point is a multiple of 128 lanes.
    w_fused = jnp.stack(
        [wl_p.reshape(c_in, n_tiles, block_n),
         wg_p.reshape(c_in, n_tiles, block_n)], axis=2,
    ).reshape(c_in, 2 * c_out_p)

    bl_p = jnp.zeros((c_out_p,), jnp.float32).at[:c_out].set(bl.astype(jnp.float32))
    bg_p = jnp.zeros((c_out_p,), jnp.float32).at[:c_out].set(bg.astype(jnp.float32))
    b_fused = jnp.stack(
        [bl_p.reshape(n_tiles, block_n),
         bg_p.reshape(n_tiles, block_n)], axis=1,
    ).reshape(1, 2 * c_out_p)

    return PackedGLUParams(w_fused, b_fused, c_out, block_n)


# --------------------------------------------------------------------------- #
# Kernels
# --------------------------------------------------------------------------- #
def _glu_kernel(x_ref, w_ref, b_ref, o_ref, *, compute_dtype, precision):
    # In-kernel activation cast (no bf16 HBM copy of x); f32 accumulation on MXU.
    acc = jnp.dot(x_ref[...].astype(compute_dtype), w_ref[...],
                  preferred_element_type=jnp.float32, precision=precision)
    acc = acc + b_ref[...]                     # f32 bias (lin | gate interleaved tile)
    bn = o_ref.shape[-1]
    lin = acc[:, :bn]                          # static lane-aligned split (bn % 128 == 0)
    gate = jax.nn.sigmoid(acc[:, bn:])
    # Dropout in eval mode == identity.
    o_ref[...] = (lin * gate).astype(o_ref.dtype)


def _glu_kernel_ktiled(x_ref, w_ref, b_ref, o_ref, acc_ref, *, compute_dtype,
                       precision):
    k = pl.program_id(2)

    @pl.when(k == 0)
    def _():
        acc_ref[...] = jnp.zeros_like(acc_ref)

    acc_ref[...] += jnp.dot(x_ref[...].astype(compute_dtype), w_ref[...],
                            preferred_element_type=jnp.float32,
                            precision=precision)

    @pl.when(k == pl.num_programs(2) - 1)
    def _():
        acc = acc_ref[...] + b_ref[...]
        bn = o_ref.shape[-1]
        o_ref[...] = (acc[:, :bn] * jax.nn.sigmoid(acc[:, bn:])).astype(o_ref.dtype)


# --------------------------------------------------------------------------- #
# Forward wrapper
# --------------------------------------------------------------------------- #
def gated_linear_unit(x, mask, params: PackedGLUParams, memory=None, *,
                      block_m=None, block_k=None, precision=None):
    """Pallas TPU implementation of GatedLinearUnit.forward (eval mode).

    x : (..., C_in); params from pack_glu_params (packed once at init).
    mask, memory : unused by the PyTorch forward (kept for signature parity).
    precision : pass jax.lax.Precision.HIGHEST for a true-f32 matmul path.
    """
    del mask, memory  # unused by the PyTorch forward

    w_fused, b_fused, c_out, block_n = params
    orig_shape = x.shape
    c_in = orig_shape[-1]
    assert w_fused.shape[0] == c_in
    c_out_p = w_fused.shape[1] // 2
    n_tiles = c_out_p // block_n
    out_dtype = x.dtype
    cd = w_fused.dtype

    x2d = x.reshape(-1, c_in)          # NOTE: no dtype cast here (done in-kernel)
    m = x2d.shape[0]

    x_eb = jnp.dtype(x.dtype).itemsize
    w_eb = jnp.dtype(cd).itemsize
    out_eb = jnp.dtype(out_dtype).itemsize
    row_align = 16 if x_eb < 4 else 8

    gen = _tpu_generation()
    vmem_cap = _vmem_capacity_bytes(gen)
    vmem_budget = int(vmem_cap * 0.75)     # ~48 MiB on v7x, ~96 MiB on v5e/v6e
    min_steps = 4 if gen >= 7 else 2       # v7x: >= 2 grid steps per TensorCore

    # ---- row tile -----------------------------------------------------------
    if block_m is None:
        cap_m = 2048 if vmem_budget >= (96 << 20) else 512
        block_m = m if m <= cap_m else cap_m          # full extent is layout-legal
        # Keep enough parallel grid steps for pipelining / both v7x TensorCores.
        while (n_tiles * pl.cdiv(m, block_m) < min_steps
               and block_m >= 2 * row_align):
            block_m = max(_round_up(pl.cdiv(block_m, 2), row_align), row_align)

    # ---- K tile / VMEM fit --------------------------------------------------
    def _buf_bytes(bm, bk, bn, ktiled):
        b = 2 * (bm * bk * x_eb              # x tile (double buffered, orig dtype)
                 + bk * 2 * bn * w_eb        # fused-weight slab (double buffered)
                 + 8 * 2 * bn * 4            # bias (sublane padded, f32)
                 + bm * bn * out_eb)         # output tile
        if ktiled:
            b += bm * 2 * bn * 4             # f32 accumulator scratch
        return b

    if block_k is None:
        block_k = c_in
        # Prefer K-tiling over shrinking block_m: keeps MXU tiles big under
        # v7x's 64 MiB VMEM.
        while _buf_bytes(block_m, block_k, block_n, block_k < c_in) > vmem_budget:
            half_k = block_k // 2
            if half_k >= 256 and half_k % 128 == 0 and c_in % half_k == 0:
                block_k = half_k
            elif block_m > 2 * row_align:
                block_m = _round_up(pl.cdiv(block_m, 2), row_align)
            else:
                break
    assert block_k == c_in or (block_k % 128 == 0 and c_in % block_k == 0)

    grid_m = pl.cdiv(m, block_m)
    grid_k = (c_in // block_k) if block_k < c_in else 1
    ktiled = grid_k > 1

    # ---- grid order: minimize re-read HBM traffic ---------------------------
    # Weights-outer re-reads x (n_tiles-1) extra times; rows-outer re-reads the
    # weight slab (grid_m-1) extra times.
    extra_x_bytes = (n_tiles - 1) * m * c_in * x_eb
    extra_w_bytes = (grid_m - 1) * c_in * 2 * c_out_p * w_eb
    weights_outer = extra_x_bytes <= extra_w_bytes

    if ktiled:
        if weights_outer:
            grid = (n_tiles, grid_m, grid_k)
            x_map = lambda j, i, k: (i, k)
            w_map = lambda j, i, k: (k, j)
            b_map = lambda j, i, k: (0, j)
            o_map = lambda j, i, k: (i, j)
        else:
            grid = (grid_m, n_tiles, grid_k)
            x_map = lambda i, j, k: (i, k)
            w_map = lambda i, j, k: (k, j)
            b_map = lambda i, j, k: (0, j)
            o_map = lambda i, j, k: (i, j)
        dims = ("parallel", "parallel", "arbitrary")
        kernel = functools.partial(_glu_kernel_ktiled, compute_dtype=cd,
                                   precision=precision)
        scratch = [pltpu.VMEM((block_m, 2 * block_n), jnp.float32)]
    else:
        if weights_outer:
            grid = (n_tiles, grid_m)
            x_map = lambda j, i: (i, 0)
            w_map = lambda j, i: (0, j)
            b_map = lambda j, i: (0, j)
            o_map = lambda j, i: (i, j)
        else:
            grid = (grid_m, n_tiles)
            x_map = lambda i, j: (i, 0)
            w_map = lambda i, j: (0, j)
            b_map = lambda i, j: (0, j)
            o_map = lambda i, j: (i, j)
        dims = ("parallel", "parallel")
        kernel = functools.partial(_glu_kernel, compute_dtype=cd,
                                   precision=precision)
        scratch = []

    # ---- VMEM budget / cost hint --------------------------------------------
    real_buf = _buf_bytes(block_m, block_k, block_n, ktiled)
    vmem_limit = min(max(int(real_buf * 1.4) + (4 << 20), 32 << 20),
                     int(vmem_cap * 0.9))

    cost = pl.CostEstimate(
        flops=2 * m * c_in * 2 * c_out_p,
        transcendentals=m * c_out_p,
        bytes_accessed=int(
            x2d.size * x_eb * (n_tiles if weights_outer else 1)
            + w_fused.size * w_eb * (1 if weights_outer else grid_m)
            + b_fused.size * 4 + m * c_out_p * out_eb),
    )

    out2d = pl.pallas_call(
        kernel,
        out_shape=jax.ShapeDtypeStruct((m, c_out_p), out_dtype),
        grid_spec=pltpu.PrefetchScalarGridSpec(
            num_scalar_prefetch=0,
            grid=grid,
            in_specs=[
                pl.BlockSpec((block_m, block_k), x_map),        # x rows (orig dtype)
                pl.BlockSpec((block_k, 2 * block_n), w_map),    # fused Wl|Wg tile
                pl.BlockSpec((1, 2 * block_n), b_map),          # fused bias tile
            ],
            out_specs=pl.BlockSpec((block_m, block_n), o_map),
            scratch_shapes=scratch,
        ),
        compiler_params=pltpu.CompilerParams(
            dimension_semantics=dims,
            vmem_limit_bytes=vmem_limit,
        ),
        cost_estimate=cost,
    )(x2d, w_fused, b_fused)

    if c_out_p != c_out:
        out2d = out2d[:, :c_out]
    return out2d.reshape(orig_shape[:-1] + (c_out,))


# --------------------------------------------------------------------------- #
# Demo / correctness check
# --------------------------------------------------------------------------- #
def _init_params(key, c_in, c_out, dtype=jnp.float32):
    """Deterministic init mimicking nn.Linear's uniform(-1/sqrt(C_in), 1/sqrt(C_in))."""
    k1, k2, k3, k4 = jax.random.split(key, 4)
    bound = 1.0 / float(c_in) ** 0.5
    wl = jax.random.uniform(k1, (c_in, c_out), dtype, -bound, bound)
    bl = jax.random.uniform(k2, (c_out,), dtype, -bound, bound)
    wg = jax.random.uniform(k3, (c_in, c_out), dtype, -bound, bound)
    bg = jax.random.uniform(k4, (c_out,), dtype, -bound, bound)
    return wl, bl, wg, bg


def _glu_reference(x, wl, bl, wg, bg):
    hi = jax.lax.Precision.HIGHEST
    lin = jnp.dot(x, wl, precision=hi) + bl
    gate = jax.nn.sigmoid(jnp.dot(x, wg, precision=hi) + bg)
    return lin * gate                      # eval-mode dropout == identity


if __name__ == "__main__":
    key = jax.random.PRNGKey(0)
    batch, seq, c_in, c_out = 2, 8, 32, 32

    kx, kp = jax.random.split(key)
    x = jax.random.normal(kx, (batch, seq, c_in), jnp.float32)
    mask = jnp.ones((batch, seq), jnp.float32)     # unused by forward (parity)
    wl, bl, wg, bg = _init_params(kp, c_in, c_out)

    ref = _glu_reference(x, wl, bl, wg, bg)

    # Parameters are packed ONCE (not on the per-forward-call path).
    params_bf16 = pack_glu_params(wl, bl, wg, bg)                       # default bf16 MXU path
    params_f32 = pack_glu_params(wl, bl, wg, bg, compute_dtype=jnp.float32)

    # Default path: bf16 compute on the MXU, f32 accumulation/bias/sigmoid/product.
    out = jax.block_until_ready(gated_linear_unit(x, mask, params_bf16))
    assert out.shape == (batch, seq, c_out)
    assert jnp.allclose(out, ref, atol=5e-2, rtol=5e-2)

    # Explicit full-f32 path (parity with a PyTorch f32 Linear).
    out_f32 = jax.block_until_ready(
        gated_linear_unit(x, mask, params_f32,
                          precision=jax.lax.Precision.HIGHEST))
    assert out_f32.shape == (batch, seq, c_out)
    assert jnp.allclose(out_f32, ref, atol=1e-5, rtol=1e-5)

    # Ragged M (m not divisible by block_m) exercises masked partial stores.
    xr = jax.random.normal(kx, (3, 7, c_in), jnp.float32)
    ref_r = _glu_reference(xr, wl, bl, wg, bg)
    out_r = jax.block_until_ready(
        gated_linear_unit(xr, None, params_f32, block_m=8,
                          precision=jax.lax.Precision.HIGHEST))
    assert out_r.shape == (3, 7, c_out)
    assert jnp.allclose(out_r, ref_r, atol=1e-5, rtol=1e-5)

    print("KERNEL_OK")
</pallas_src>

<mosaic_0001>
module attributes {stable_mosaic.version = 11 : i64} {
  func.func @_glu_kernel(%arg0: i32, %arg1: i32, %arg2: memref<8x32xf32, #tpu.memory_space<vmem>>, %arg3: memref<32x256xbf16, #tpu.memory_space<vmem>>, %arg4: memref<1x256xf32, #tpu.memory_space<vmem>>, %arg5: memref<8x128xf32, #tpu.memory_space<vmem>>) attributes {dimension_semantics = [#tpu.dimension_semantics<parallel>, #tpu.dimension_semantics<parallel>], iteration_bounds = array<i64: 1, 2>, scalar_prefetch = 0 : i64, scratch_operands = 0 : i64, tpu.core_type = #tpu.core_type<tc>, window_params = [{transform_indices = @transform_0, window_bounds = array<i64: 8, 32>}, {transform_indices = @transform_1, window_bounds = array<i64: 32, 256>}, {transform_indices = @transform_2, window_bounds = array<i64: 1, 256>}, {transform_indices = @transform_3, window_bounds = array<i64: 8, 128>}]} {
    %c0 = arith.constant 0 : index
    %c0_0 = arith.constant 0 : index
    %0 = vector.load %arg2[%c0, %c0_0] : memref<8x32xf32, #tpu.memory_space<vmem>>, vector<8x32xf32>
    %1 = arith.truncf %0 : vector<8x32xf32> to vector<8x32xbf16>
    %c0_1 = arith.constant 0 : index
    %c0_2 = arith.constant 0 : index
    %2 = vector.load %arg3[%c0_1, %c0_2] : memref<32x256xbf16, #tpu.memory_space<vmem>>, vector<32x256xbf16>
    %cst = arith.constant dense<0.000000e+00> : vector<8x256xf32>
    %3 = tpu.matmul %1, %2, %cst {dimension_numbers = #tpu.dot_dimension_numbers<[1], [0], [0], [1], [0, 0, 1, 1], [], []>} : vector<8x32xbf16>, vector<32x256xbf16>, vector<8x256xf32> -> vector<8x256xf32>
    %c0_3 = arith.constant 0 : index
    %c0_4 = arith.constant 0 : index
    %4 = vector.load %arg4[%c0_3, %c0_4] : memref<1x256xf32, #tpu.memory_space<vmem>>, vector<1x256xf32>
    %5 = vector.broadcast %4 : vector<1x256xf32> to vector<8x256xf32>
    %6 = arith.addf %3, %5 : vector<8x256xf32>
    %7 = vector.extract_strided_slice %6 {offsets = [0, 0], sizes = [8, 128], strides = [1, 1]} : vector<8x256xf32> to vector<8x128xf32>
    %8 = vector.extract_strided_slice %6 {offsets = [0, 128], sizes = [8, 128], strides = [1, 1]} : vector<8x256xf32> to vector<8x128xf32>
    %9 = arith.negf %8 : vector<8x128xf32>
    %10 = math.exp %9 : vector<8x128xf32>
    %cst_5 = arith.constant 1.000000e+00 : f32
    %11 = vector.broadcast %cst_5 : f32 to vector<8x128xf32>
    %12 = arith.addf %11, %10 : vector<8x128xf32>
    %13 = arith.divf %11, %12 : vector<8x128xf32>
    %14 = arith.mulf %7, %13 : vector<8x128xf32>
    %c0_6 = arith.constant 0 : index
    %c0_7 = arith.constant 0 : index
    %15 = vector.load %arg5[%c0_6, %c0_7] : memref<8x128xf32, #tpu.memory_space<vmem>>, vector<8x128xf32>
    tpu.vector_store %arg5[%c0_6, %c0_7], %14 {strides = array<i32>} : memref<8x128xf32, #tpu.memory_space<vmem>>, vector<8x128xf32>,
    return
  }
  func.func @transform_0(%arg0: i32, %arg1: i32) -> (i32, i32) {
    %c0_i32 = arith.constant 0 : i32
    %c0_i32_0 = arith.constant 0 : i32
    return %arg1, %c0_i32 : i32, i32
  }
  func.func @transform_1(%arg0: i32, %arg1: i32) -> (i32, i32) {
    %c0_i32 = arith.constant 0 : i32
    %c0_i32_0 = arith.constant 0 : i32
    return %c0_i32, %arg0 : i32, i32
  }
  func.func @transform_2(%arg0: i32, %arg1: i32) -> (i32, i32) {
    %c0_i32 = arith.constant 0 : i32
    %c0_i32_0 = arith.constant 0 : i32
    return %c0_i32, %arg0 : i32, i32
  }
  func.func @transform_3(%arg0: i32, %arg1: i32) -> (i32, i32) {
    %c0_i32 = arith.constant 0 : i32
    return %arg1, %arg0 : i32, i32
  }
}

</mosaic_0001>

<llo_original>
// kernel: tpu_custom_call.1
$region0: #{tpu_custom_call.1}
  #allocation0 [shape = 'u32[]', space=smem, size = 0x4, offset = 0x4, fixed_abs, tag = 'smem constant byte address 0x4 - core index']
  #allocation1 [shape = 'u32[72,128]{1,0:T(1,128)}', space=vmem, size = 0x9000, scoped, tag = 'internal scratch']
  %s0 = inlined_call_operand.hbm [shape: f32[16,32], index: 0, kind: input, shape index: {}]
  %s1 = inlined_call_operand.hbm [shape: bf16[32,256], index: 1, kind: input, shape index: {}]
  %s2 = inlined_call_operand.hbm [shape: f32[1,256], index: 2, kind: input, shape index: {}]
  %s3 = inlined_call_operand.hbm [shape: f32[16,128], index: 3, kind: output, shape index: {}]
  %s4 = sld [smem:[#allocation0]]
  $region57: #{tpu_custom_call.1} parent=0
    _
  %s6 = ssub.s32 1, %s4
  %s7 = scalar_select 0, %s6, %s4
  $region1: #{tpu_custom_call.1} parent=0
    #allocation2 [shape = 'u8[8192]{0}', space=vmem, size = 0x2000, scoped, tag = 'input window, operand 0']
    #allocation3 [shape = 's32[2]{0}', space=sflag, size = 0x8, scoped, tag = 'scoped memory for tpu_custom_call.1']
    #allocation4 [shape = 's32[2]{0}', space=sflag, size = 0x8, scoped, tag = 'scoped memory for tpu_custom_call.1']
    #allocation5 [shape = 'u8[16384]{0}', space=vmem, size = 0x4000, scoped, tag = 'input window, operand 1, single buffered']
    #allocation6 [shape = 's32[1]{0}', space=sflag, size = 0x4, scoped, tag = 'scoped memory for tpu_custom_call.1']
    #allocation7 [shape = 'u8[1024]{0}', space=vmem, size = 0x400, scoped, tag = 'input window, operand 2, single buffered']
    #allocation8 [shape = 'u8[8192]{0}', space=vmem, size = 0x2000, scoped, tag = 'output window, operand 0']
    %8 = vsyncpa [#allocation3], 0
    %s9 = scalar_lea.sflag [#allocation3], 1
    %10 = vsyncpa %s9, 0
    %11 = vsyncpa [#allocation6], 0
    %12 = vsyncpa [#allocation4], 0
    %s13 = scalar_lea.sflag [#allocation4], 1
    %14 = vsyncpa %s13, 0
    loop: start=0, step=1, limit=4
    $region2: #{tpu_custom_call.1} parent=1 // loop_pre_header
      _
    $region3: #{tpu_custom_call.1} parent=1 // loop_header
      %s16 = sphi 0, %s20
      %p17 = scmp.ge.s32.totalorder %s16, 4
      %s23 = sphi 0, %s35
      %s24 = sphi 0, %s31
      %s25 = sphi 0, %s23
      %s26 = sphi 0, %s24
      %s27 = sphi 0, %s25
      %s28 = sphi 0, %s26
      %s38 = sphi 0, %s40
      %s41 = sphi 0, %s38
      %s42 = sphi 0, %s41
      %s58 = sphi 0, %s42
      %s64 = sphi 0, %s66
      %s67 = sphi 0, %s64
      %s68 = sphi 0, %s67
      %s84 = sphi 0, %s68
      %s90 = sphi 0, %s92
      %s93 = sphi 0, %s90
      %s94 = sphi 0, %s93
      %s110 = sphi 0, %s94
      %s118 = sphi 0, %s120
      %s121 = sphi 0, %s118
      %s122 = sphi 0, %s121
      %s138 = sphi 0, %s122
    $region4: #{tpu_custom_call.1} parent=1 // loop_header_branch
      %19 = sbr.rel (%p17) target = $region8
    $region5: #{tpu_custom_call.1} parent=1 // loop_body
      %s21 = ssub.s32 %s16, 1
      %s22 = ssub.s32 %s16, 2
      %s29 = sadd.s32 1, %s24
      %p30 = scmp.ge.s32.totalorder %s29, 2
      %s31 = scalar_select %p30, 0, %s29
      %s32 = sadd.s32 1, %s23
      %s33 = scalar_select %p30, %s32, %s23
      %p34 = scmp.ge.s32.totalorder %s33, 1
      %s35 = scalar_select %p34, 0, %s33
      %s36 = ssub.s32 %s24, %s31
      %p37 = scmp.eq.s32.totalorder %s36, 0
      %s39 = sadd.s32 %s38, 1
      %s40 = scalar_select %p37, %s38, %s39
      %p43 = pneg %p37
      %p44 = scmp.eq.s32.totalorder %s16, 1
      %p45 = por %p43, %p44
      %p46 = scmp.ne.s32.totalorder %s38, %s41
      %p47 = scmp.eq.s32.totalorder %s16, 0
      %p48 = por %p46, %p47
      %p49 = scmp.ne.s32.totalorder %s38, %s41
      %p50 = scmp.eq.s32.totalorder %s21, 1
      %p51 = por %p49, %p50
      %p52 = scmp.ne.s32.totalorder %s41, %s42
      %p53 = scmp.eq.s32.totalorder %s21, 0
      %p54 = por %p52, %p53
      %p55 = scmp.ne.s32.totalorder %s41, %s42
      %p56 = scmp.eq.s32.totalorder %s22, 1
      %p57 = por %p55, %p56
      %p59 = scmp.ne.s32.totalorder %s42, %s58
      %p60 = scmp.eq.s32.totalorder %s22, 0
      %p61 = por %p59, %p60
      %s62 = ssub.s32 %s23, %s35
      %p63 = scmp.eq.s32.totalorder %s62, 0
      %s65 = sadd.s32 %s64, 1
      %s66 = scalar_select %p63, %s64, %s65
      %p69 = pneg %p63
      %p70 = scmp.eq.s32.totalorder %s16, 1
      %p71 = por %p69, %p70
      %p72 = scmp.ne.s32.totalorder %s64, %s67
      %p73 = scmp.eq.s32.totalorder %s16, 0
      %p74 = por %p72, %p73
      %p75 = scmp.ne.s32.totalorder %s64, %s67
      %p76 = scmp.eq.s32.totalorder %s21, 1
      %p77 = por %p75, %p76
      %p78 = scmp.ne.s32.totalorder %s67, %s68
      %p79 = scmp.eq.s32.totalorder %s21, 0
      %p80 = por %p78, %p79
      %p81 = scmp.ne.s32.totalorder %s67, %s68
      %p82 = scmp.eq.s32.totalorder %s22, 1
      %p83 = por %p81, %p82
      %p85 = scmp.ne.s32.totalorder %s68, %s84
      %p86 = scmp.eq.s32.totalorder %s22, 0
      %p87 = por %p85, %p86
      %s88 = ssub.s32 %s23, %s35
      %p89 = scmp.eq.s32.totalorder %s88, 0
      %s91 = sadd.s32 %s90, 1
      %s92 = scalar_select %p89, %s90, %s91
      %p95 = pneg %p89
      %p96 = scmp.eq.s32.totalorder %s16, 1
      %p97 = por %p95, %p96
      %p98 = scmp.ne.s32.totalorder %s90, %s93
      %p99 = scmp.eq.s32.totalorder %s16, 0
      %p100 = por %p98, %p99
      %p101 = scmp.ne.s32.totalorder %s90, %s93
      %p102 = scmp.eq.s32.totalorder %s21, 1
      %p103 = por %p101, %p102
      %p104 = scmp.ne.s32.totalorder %s93, %s94
      %p105 = scmp.eq.s32.totalorder %s21, 0
      %p106 = por %p104, %p105
      %p107 = scmp.ne.s32.totalorder %s93, %s94
      %p108 = scmp.eq.s32.totalorder %s22, 1
      %p109 = por %p107, %p108
      %p111 = scmp.ne.s32.totalorder %s94, %s110
      %p112 = scmp.eq.s32.totalorder %s22, 0
      %p113 = por %p111, %p112
      %s114 = ssub.s32 %s24, %s31
      %s115 = ssub.s32 %s23, %s35
      %s116 = sor.u32 %s114, %s115
      %p117 = scmp.eq.s32.totalorder %s116, 0
      %s119 = sadd.s32 %s118, 1
      %s120 = scalar_select %p117, %s118, %s119
      %p123 = pneg %p117
      %p124 = scmp.eq.s32.totalorder %s16, 1
      %p125 = por %p123, %p124
      %p126 = scmp.ne.s32.totalorder %s118, %s121
      %p127 = scmp.eq.s32.totalorder %s16, 0
      %p128 = por %p126, %p127
      %p129 = scmp.ne.s32.totalorder %s118, %s121
      %p130 = scmp.eq.s32.totalorder %s21, 1
      %p131 = por %p129, %p130
      %p132 = scmp.ne.s32.totalorder %s121, %s122
      %p133 = scmp.eq.s32.totalorder %s21, 0
      %p134 = por %p132, %p133
      %p135 = scmp.ne.s32.totalorder %s121, %s122
      %p136 = scmp.eq.s32.totalorder %s22, 1
      %p137 = por %p135, %p136
      %p139 = scmp.ne.s32.totalorder %s122, %s138
      %p140 = scmp.eq.s32.totalorder %s22, 0
      %p141 = por %p139, %p140
      %p142 = scmp.le.s32.totalorder 1, %s16
      %p143 = scmp.lt.s32.totalorder %s16, 3
      %p144 = pnand %p142, %p143
      %p145 = pneg %p144
      // Predicated region
      $region9: #{tpu_custom_call.1} parent=5 // pred_check
        _
      $region10: #{tpu_custom_call.1} parent=5 // pred_check_branch
        %147 = sbr.rel (%p144) target = $region12
      $region11: #{tpu_custom_call.1} parent=5 // pred_region
        %s148 = ssub.s32 %s16, 1
        // Predicated region
        $region13: #{tpu_custom_call.1} parent=11 // pred_check
          %p149 = pneg %p80
        $region14: #{tpu_custom_call.1} parent=11 // pred_check_branch
          %151 = sbr.rel (%p149) target = $region16
        $region15: #{tpu_custom_call.1} parent=11 // pred_region
          %s152 = smul.u32 2, %s25
          %154 = vsyncadd [#allocation6], 0
          %s155 = smul.addr %s152, 4
          %s156 = scalar_lea.hbm %s1, %s155
          %s157 = sshll.u32 %s156, 4
          %s158 = int_to_ptr.hbm [resolvable:$true] %s157
          %s159 = sshll.u32 [#allocation5], 4
          %s160 = int_to_ptr.vmem [resolvable:$true] %s159
          %165 = dma.hbm_to_vmem [thread:$0]  %s158, 512, %s160, [#allocation6], 128, 128, 8
        $region16: #{tpu_custom_call.1} parent=11 // pred_fallthru
          _
        // Predicated region
        $region17: #{tpu_custom_call.1} parent=11 // pred_check
          %p166 = pneg %p106
        $region18: #{tpu_custom_call.1} parent=11 // pred_check_branch
          %168 = sbr.rel (%p166) target = $region20
        $region19: #{tpu_custom_call.1} parent=11 // pred_region
          %s169 = smul.u32 2, %s25
          %171 = vsyncadd [#allocation6], 0
          %s172 = scalar_lea.hbm %s2, %s169
          %s174 = sshll.u32 %s172, 4
          %s175 = int_to_ptr.hbm [resolvable:$true] %s174
          %s176 = sshll.u32 [#allocation7], 4
          %s177 = int_to_ptr.vmem [resolvable:$true] %s176
          %179 = dma.hbm_to_vmem [thread:$0]  %s175, 32, %s177, [#allocation6]
        $region20: #{tpu_custom_call.1} parent=11 // pred_fallthru
          _
      $region12: #{tpu_custom_call.1} parent=5 // pred_fallthru
        _
      %p180 = scmp.lt.s32.totalorder %s16, 2
      // Predicated region
      $region21: #{tpu_custom_call.1} parent=5 // pred_check
        %p181 = pneg %p180
      $region22: #{tpu_custom_call.1} parent=5 // pred_check_branch
        %183 = sbr.rel (%p181) target = $region24
      $region23: #{tpu_custom_call.1} parent=5 // pred_region
        // Predicated region
        $region25: #{tpu_custom_call.1} parent=23 // pred_check
          %p184 = pneg %p48
        $region26: #{tpu_custom_call.1} parent=23 // pred_check_branch
          %186 = sbr.rel (%p184) target = $region28
        $region27: #{tpu_custom_call.1} parent=23 // pred_region
          %s187 = sand.u32 %s38, 1
          %s188 = scalar_lea.sflag [#allocation3], %s187
          %s189 = sand.u32 %s38, 1
          %s190 = smul.addr %s189, 8
          %s191 = scalar_lea.vmem [#allocation2], %s190
          %193 = vsyncadd %s188, 0
          %s194 = smul.addr %s24, 8
          %s195 = scalar_lea.hbm %s0, %s194
          %s197 = sshll.u32 %s195, 4
          %s198 = int_to_ptr.hbm [resolvable:$true] %s197
          %s199 = sshll.u32 %s191, 4
          %s200 = int_to_ptr.vmem [resolvable:$true] %s199
          %202 = dma.hbm_to_vmem [thread:$0]  %s198, 128, %s200, %s188
        $region28: #{tpu_custom_call.1} parent=23 // pred_fallthru
          _
      $region24: #{tpu_custom_call.1} parent=5 // pred_fallthru
        _
      %p203 = scmp.le.s32.totalorder 1, %s16
      %p204 = scmp.lt.s32.totalorder %s16, 3
      %p205 = pnand %p203, %p204
      %p206 = pneg %p205
      // Predicated region
      $region29: #{tpu_custom_call.1} parent=5 // pred_check
        _
      $region30: #{tpu_custom_call.1} parent=5 // pred_check_branch
        %208 = sbr.rel (%p205) target = $region32
      $region31: #{tpu_custom_call.1} parent=5 // pred_region
        %s209 = ssub.s32 %s16, 1
        %s210 = sand.u32 %s41, 1
        %s211 = scalar_lea.sflag [#allocation3], %s210
        %s212 = sand.u32 %s41, 1
        %s213 = smul.addr %s212, 8
        %s214 = scalar_lea.vmem [#allocation2], %s213
        // Predicated region
        $region33: #{tpu_custom_call.1} parent=31 // pred_check
          %p215 = pneg %p54
        $region34: #{tpu_custom_call.1} parent=31 // pred_check_branch
          %217 = sbr.rel (%p215) target = $region36
        $region35: #{tpu_custom_call.1} parent=31 // pred_region
          %219 = dma.done %s211, 128
        $region36: #{tpu_custom_call.1} parent=31 // pred_fallthru
          _
        // Predicated region
        $region37: #{tpu_custom_call.1} parent=31 // pred_check
          %p220 = pneg %p80
        $region38: #{tpu_custom_call.1} parent=31 // pred_check_branch
          %222 = sbr.rel (%p220) target = $region40
        $region39: #{tpu_custom_call.1} parent=31 // pred_region
          %224 = dma.done [#allocation6], 512
        $region40: #{tpu_custom_call.1} parent=31 // pred_fallthru
          _
        // Predicated region
        $region41: #{tpu_custom_call.1} parent=31 // pred_check
          %p225 = pneg %p106
        $region42: #{tpu_custom_call.1} parent=31 // pred_check_branch
          %227 = sbr.rel (%p225) target = $region44
        $region43: #{tpu_custom_call.1} parent=31 // pred_region
          %229 = dma.done [#allocation6], 32
        $region44: #{tpu_custom_call.1} parent=31 // pred_fallthru
          _
        %s230 = sand.u32 %s41, 1
        %s231 = scalar_lea.sflag [#allocation3], %s230
        %s232 = sand.u32 %s41, 1
        %s233 = smul.addr %s232, 8
        %s234 = scalar_lea.vmem [#allocation2], %s233
        %p235 = pneg %p54
        %p236 = pneg %p51
        %p237 = pneg %p80
        %p238 = pneg %p77
        %p239 = pneg %p106
        %p240 = pneg %p103
        %p241 = pneg %p134
        %p242 = pneg %p131
        %s243 = sand.u32 %s121, 1
        %s244 = scalar_lea.sflag [#allocation4], %s243
        %s245 = sand.u32 %s121, 1
        %s246 = smul.addr %s245, 8
        %s247 = scalar_lea.vmem [#allocation8], %s246
        %s248 = smul.u32 2, %s25
        %s249 = smul.u32 2, %s25
        %v251 = vld [vmem:[%s214] sm:$0xff]
        %v252 = vpack.c.bf16 %v251, %v251
        %v253 = vld [vmem:[#allocation5] sm:$0xff]
        %v254 = vld [vmem:[#allocation5 + $0x8] sm:$0xff]
        %v255 = vld [vmem:[#allocation5 + $0x10] sm:$0xff]
        %v256 = vld [vmem:[#allocation5 + $0x18] sm:$0xff]
        %v257 = vld [vmem:[#allocation7] sm:$0x3]
        %v259 = vperm.slane %v257, 0
        %v260 = vperm.slane %v257, 1
        %v267 = vunpack.c.l.b16 %v253
        %v268 = vunpack.c.h.b16 %v253
        %v269 = vunpack.c.l.b16 %v254
        %v270 = vunpack.c.h.b16 %v254
        %v271 = vunpack.c.l.b16 %v255
        %v272 = vunpack.c.h.b16 %v255
        %v273 = vunpack.c.l.b16 %v256
        %v274 = vunpack.c.h.b16 %v256
        %v275 = vpack.c.b16 %v269, %v267
        %v276 = vpack.c.b16 %v270, %v268
        %v277 = vpack.c.b16 %v273, %v271
        %v278 = vpack.c.b16 %v274, %v272
        %vm283 = vcmask 261120
        %v285 = vsel %vm283, %v252, 0
        %287 = vmatpush.bf16.msra.mxu0 0
        %288 = vmatpush.bf16.msra.mxu0 0
        %289 = vmatpush.bf16.msra.mxu0 0
        %290 = vmatpush.bf16.msra.mxu0 0
        %291 = vmatpush.bf16.msra.mxu0 0
        %292 = vmatpush.bf16.msra.mxu0 0
        %293 = vmatpush.bf16.msra.mxu0 %v277
        %294 = vmatpush.bf16.msra.mxu0 %v275
        %295 = vmatmul.bf16.gmra.mxu0 %v285
        %v296 = vpop.f32.mrf.mxu0
        %v297 = vadd.f32 %v259, %v296
        %v298 = vpop.f32.mrf.mxu0
        %299 = vdwg.mxu0
        %300 = vmatpush.bf16.msra.mxu0 0
        %301 = vmatpush.bf16.msra.mxu0 0
        %302 = vmatpush.bf16.msra.mxu0 0
        %303 = vmatpush.bf16.msra.mxu0 0
        %304 = vmatpush.bf16.msra.mxu0 0
        %305 = vmatpush.bf16.msra.mxu0 0
        %306 = vmatpush.bf16.msra.mxu0 %v278
        %307 = vmatpush.bf16.msra.mxu0 %v276
        %308 = vmatmul.bf16.gmra.mxu0 %v285
        %v309 = vpop.f32.mrf.mxu0
        %v310 = vadd.f32 %v260, %v309
        %v311 = vpop.f32.mrf.mxu0
        %312 = vdwg.mxu0
        %v313 = vxor.u32 %v310, 2147483648
        %v314 = vmul.f32 %v313, 1.442695
        %v315 = vpow.pop %v314
        %v316 = vadd.f32 %v315, 1.0
        %v317 = vrcp.pop %v316
        %v318 = vmul.f32 %v316, %v317
        %v319 = vsub.f32 1.0, %v318
        %v320 = vmul.f32 %v317, %v319
        %v321 = vadd.f32 %v317, %v320
        %vm322 = vweird.f32 %v316
        %vm323 = vweird.f32 %v317
        %vm324 = vmor %vm322, %vm323
        %v325 = vsel %vm324, %v317, %v321
        %v326 = vand.u32 2147483647, %v316
        %vm327 = vcmp.eq.f32.partialorder %v326, 8.507059e+37
        %v328 = vand.u32 %v316, 2147483648
        %v329 = vor.u32 1.1754944e-38, %v328
        %v330 = vsel %vm327, %v329, %v325
        %v331 = vmul.f32 1.0, %v330
        %v332 = vmul.f32 %v297, %v331
        %333 = vst [vmem:[%s247] sm:$0xff] %v332
        %s334 = sand.u32 %s121, 1
        %s335 = scalar_lea.sflag [#allocation4], %s334
        %s336 = sand.u32 %s121, 1
        %s337 = smul.addr %s336, 8
        %s338 = scalar_lea.vmem [#allocation8], %s337
        // Predicated region
        $region45: #{tpu_custom_call.1} parent=31 // pred_check
          %p339 = pneg %p131
        $region46: #{tpu_custom_call.1} parent=31 // pred_check_branch
          %341 = sbr.rel (%p339) target = $region48
        $region47: #{tpu_custom_call.1} parent=31 // pred_region
          %343 = vsyncadd %s335, 0
          %s344 = sadd.s32 %s25, %s26
          %s345 = smul.addr %s344, 8
          %s346 = scalar_lea.hbm %s3, %s345
          %s348 = sshll.u32 %s338, 4
          %s349 = int_to_ptr.vmem [resolvable:$true] %s348
          %s350 = sshll.u32 %s346, 4
          %s351 = int_to_ptr.hbm [resolvable:$true] %s350
          %353 = dma.vmem_to_hbm [thread:$0]  %s349, 128, %s351, %s335
        $region48: #{tpu_custom_call.1} parent=31 // pred_fallthru
          _
      $region32: #{tpu_custom_call.1} parent=5 // pred_fallthru
        _
      %p354 = scmp.le.s32.totalorder 2, %s16
      // Predicated region
      $region49: #{tpu_custom_call.1} parent=5 // pred_check
        %p355 = pneg %p354
      $region50: #{tpu_custom_call.1} parent=5 // pred_check_branch
        %357 = sbr.rel (%p355) target = $region52
      $region51: #{tpu_custom_call.1} parent=5 // pred_region
        %s358 = ssub.s32 %s16, 2
        // Predicated region
        $region53: #{tpu_custom_call.1} parent=51 // pred_check
          %p359 = pneg %p137
        $region54: #{tpu_custom_call.1} parent=51 // pred_check_branch
          %361 = sbr.rel (%p359) target = $region56
        $region55: #{tpu_custom_call.1} parent=51 // pred_region
          %s362 = sand.u32 %s122, 1
          %s363 = scalar_lea.sflag [#allocation4], %s362
          %s364 = sand.u32 %s122, 1
          %s365 = smul.addr %s364, 8
          %s366 = scalar_lea.vmem [#allocation8], %s365
          %368 = dma.done %s363, 128
        $region56: #{tpu_custom_call.1} parent=51 // pred_fallthru
          _
      $region52: #{tpu_custom_call.1} parent=5 // pred_fallthru
        _
    $region6: #{tpu_custom_call.1} parent=1 // loop_footer
      %s20 = sadd.s32 1, %s16
    $region7: #{tpu_custom_call.1} parent=1 // loop_footer_branch
      %15 = sbr.rel target = $region3
    $region8: #{tpu_custom_call.1} parent=1 // loop_exit
      _
    %369 = vsyncpa [#allocation3], 1
    %s370 = scalar_lea.sflag [#allocation3], 1
    %371 = vsyncpa %s370, 1
    %372 = vsyncpa [#allocation6], 1
    %373 = vsyncpa [#allocation4], 1
    %s374 = scalar_lea.sflag [#allocation4], 1
    %375 = vsyncpa %s374, 1

</llo_original>
